<compile_context>
chip_gen: v7x
topology: tpu7x:2x2x1
jax: 0.10.0
libtpu: 0.0.40
codegen_flags: <defaults>
</compile_context>

<pallas_src>
import math

import jax
import jax.numpy as jnp
from jax.experimental import pallas as pl
from jax.experimental.pallas import tpu as pltpu


# ---- tiling constants -------------------------------------------------------
_LANE = 128
_SUBLANE = 8
_SUBLANE_ALIGN = 32                    # covers f32(8)/bf16(16)/int8(32) sublane packing
                                       # (sub-byte dtypes would need 64 -- out of scope here)
_LANE_CANDIDATE_COLS = (4096, 2048, 1024, 512, 256, 128)
_TARGET_TILE_BYTES = 4 * 1024 * 1024   # constant-byte tile: 4 MiB regardless of dtype
_SINGLE_BLOCK_VMEM_BYTES = 4 * 1024 * 1024  # per-buffer gate for the no-grid fast path
_VMEM_LIMIT_BYTES = 48 * 1024 * 1024   # raised scoped limit; < v7x 64 MiB physical


def _round_up(x: int, m: int) -> int:
    return (x + m - 1) // m * m


def _identity_block_kernel(x_ref, o_ref):
    # Subclass skeleton: replace this body with the real per-block encoding compute.
    o_ref[...] = x_ref[...]


def _mem_cost(bytes_moved: int) -> pl.CostEstimate:
    return pl.CostEstimate(flops=0, transcendentals=0, bytes_accessed=bytes_moved)


def _single_block_copy(x2d: jax.Array, total_bytes: int) -> jax.Array:
    """Small-input path: one full-extent block, no grid, no padding/reshuffle."""
    return pl.pallas_call(
        _identity_block_kernel,
        out_shape=jax.ShapeDtypeStruct(x2d.shape, x2d.dtype),
        cost_estimate=_mem_cost(2 * total_bytes),
    )(x2d)


def _tiled_copy_2d(x2d: jax.Array, itemsize: int) -> jax.Array:
    """Lane-dense tiled path: [rows, cols] slab, cols a multiple of 128, row grid."""
    rows, cols = x2d.shape
    # Constant-byte tiles (~4 MiB): rows scale with 1/itemsize so bf16/int8 inputs do
    # not double/quadruple the grid-step count relative to f32.
    tile_rows = max(
        _SUBLANE_ALIGN,
        (_TARGET_TILE_BYTES // (cols * itemsize)) // _SUBLANE_ALIGN * _SUBLANE_ALIGN,
    )
    tile_rows = min(tile_rows, _round_up(rows, _SUBLANE_ALIGN))
    grid = (pl.cdiv(rows, tile_rows),)  # partial last block handled by Pallas; no pad

    return pl.pallas_call(
        _identity_block_kernel,
        out_shape=jax.ShapeDtypeStruct((rows, cols), x2d.dtype),
        grid=grid,
        in_specs=[pl.BlockSpec((tile_rows, cols), lambda i: (i, 0))],
        out_specs=pl.BlockSpec((tile_rows, cols), lambda i: (i, 0)),
        compiler_params=pltpu.CompilerParams(
            # independent row tiles -> shard across both TCs where supported (v7x)
            dimension_semantics=("parallel",),
            vmem_limit_bytes=_VMEM_LIMIT_BYTES,
        ),
        cost_estimate=_mem_cost(2 * rows * cols * itemsize),
    )(x2d)


def identity_encode_pallas(in_tensor: jax.Array) -> jax.Array:
    """Materialized identity encoding (subclass-kernel skeleton)."""
    shape = in_tensor.shape
    total = math.prod(shape) if shape else 1
    if total == 0:
        return in_tensor
    itemsize = jnp.dtype(in_tensor.dtype).itemsize
    total_bytes = total * itemsize
    last = shape[-1]

    # --- small-input fast path: single full-extent block, no grid -------------------
    x2d_natural = in_tensor.reshape(-1, last)
    nat_rows = x2d_natural.shape[0]
    nat_footprint = _round_up(nat_rows, _SUBLANE) * _round_up(last, _LANE) * itemsize
    if nat_footprint <= _SINGLE_BLOCK_VMEM_BYTES:
        return _single_block_copy(x2d_natural, total_bytes).reshape(shape)

    # --- large path: lane-dense slab with an exactly-dividing column count ----------
    # (identity is elementwise, so the feature axis carries no semantics; a real
    #  subclass encoding would instead keep in_dim on the lane axis.)
    flat = in_tensor.reshape(total)  # bitcast reshape for default row-major layouts
    for cols in _LANE_CANDIDATE_COLS:
        if total % cols == 0:
            out2d = _tiled_copy_2d(flat.reshape(total // cols, cols), itemsize)
            return out2d.reshape(shape)

    # --- residual path (total not a multiple of 128): main slab + tiny tail ---------
    # TODO(synk): the prefix slice + concat below each cost one extra HBM pass; a
    #             concrete subclass with real compute should fold the tail into the
    #             kernel (e.g. via a BoundedSlice block) instead.
    cols = 1024
    main_len = (total // cols) * cols
    if main_len == 0:
        return in_tensor
    main_out = _tiled_copy_2d(flat[:main_len].reshape(main_len // cols, cols), itemsize)
    tail = flat[main_len:]  # < 1024 elements; identity pass-through
    out_flat = jnp.concatenate([main_out.reshape(main_len), tail])
    return out_flat.reshape(shape)


class FieldComponent:
    """Field modules that can be combined to store and compute the fields."""

    def __init__(self, in_dim=None, out_dim=None) -> None:
        self.in_dim = in_dim
        self.out_dim = out_dim

    def build_nn_modules(self) -> None:
        """No torch.nn members to instantiate in the JAX port."""

    def set_in_dim(self, in_dim: int) -> None:
        if in_dim <= 0:
            raise ValueError("Input dimension should be greater than zero")
        self.in_dim = in_dim

    def get_out_dim(self) -> int:
        if self.out_dim is None:
            raise ValueError("Output dimension has not been set")
        return self.out_dim

    def __call__(self, in_tensor: jax.Array) -> jax.Array:
        return self.forward(in_tensor)


class Encoding(FieldComponent):
    """JAX/Pallas port of the abstract `Encoding` field component.

    Args:
        in_dim: input dimension of the tensor (last axis).
        passthrough: if True (default), the literal identity encoding returns the
            input with zero HBM traffic.  If False, the tiled Pallas copy (the
            subclass-kernel skeleton) materializes the output.
    """

    def __init__(self, in_dim: int, passthrough: bool = True) -> None:
        if in_dim <= 0:
            raise ValueError("Input dimension should be greater than zero")
        # identity base-class semantics: out_dim == in_dim
        super().__init__(in_dim=in_dim, out_dim=in_dim)
        self.passthrough = passthrough

    @classmethod
    def get_tcnn_encoding_config(cls) -> dict:
        raise NotImplementedError("Encoding does not have a TCNN implementation")

    def forward(self, in_tensor: jax.Array) -> jax.Array:
        assert in_tensor.shape[-1] == self.in_dim, (
            f"expected last dim {self.in_dim}, got {in_tensor.shape[-1]}"
        )
        if self.passthrough:
            # Literal identity: eliminate the copy entirely (perf-review item #1).
            return in_tensor
        # Materialized Pallas path: skeleton a concrete subclass fills with compute.
        return identity_encode_pallas(in_tensor)


if __name__ == "__main__":
    key = jax.random.PRNGKey(0)
    in_dim = 4
    x = jax.random.normal(key, (2, 16, in_dim), dtype=jnp.float32)

    # Default: literal identity -> zero-copy passthrough.
    enc = Encoding(in_dim=in_dim)
    out = jax.block_until_ready(enc(x))
    assert out.shape == (2, 16, enc.get_out_dim())
    assert out.dtype == x.dtype
    assert bool(jnp.array_equal(out, x)), "passthrough identity mismatch"

    # Materialized Pallas kernel (subclass skeleton): small single-block path.
    enc_mat = Encoding(in_dim=in_dim, passthrough=False)
    out_mat = jax.block_until_ready(enc_mat(x))
    assert out_mat.shape == x.shape and out_mat.dtype == x.dtype
    assert bool(jnp.array_equal(out_mat, x)), "single-block identity mismatch"

    # Larger divisible shape: lane-dense tiled path, multi-step row grid (f32).
    x_big = jax.random.normal(jax.random.PRNGKey(1), (512, 1024, in_dim),
                              dtype=jnp.float32)
    out_big = jax.block_until_ready(enc_mat(x_big))
    assert out_big.shape == x_big.shape
    assert bool(jnp.array_equal(out_big, x_big)), "tiled identity mismatch (f32)"

    # bf16: constant-byte tiles -> 2x rows per tile, half the grid steps.
    x_bf16 = x_big.astype(jnp.bfloat16)
    out_bf16 = jax.block_until_ready(enc_mat(x_bf16))
    assert out_bf16.dtype == jnp.bfloat16
    assert bool(jnp.array_equal(out_bf16, x_bf16)), "tiled identity mismatch (bf16)"

    # Non-divisible element count (84000): main-slab + tail path, no full-array pad.
    x_odd = jax.random.normal(jax.random.PRNGKey(2), (3, 1000, 7, in_dim),
                              dtype=jnp.float32)
    out_odd = jax.block_until_ready(enc_mat(x_odd))
    assert out_odd.shape == x_odd.shape
    assert bool(jnp.array_equal(out_odd, x_odd)), "tiled identity mismatch (residual)"

    print("KERNEL_OK")
</pallas_src>

<mosaic_0001>
module attributes {stable_mosaic.version = 11 : i64} {
  func.func @_identity_block_kernel(%arg0: memref<32x4xf32, #tpu.memory_space<vmem>>, %arg1: memref<32x4xf32, #tpu.memory_space<vmem>>) attributes {dimension_semantics = [], scalar_prefetch = 0 : i64, scratch_operands = 0 : i64, tpu.core_type = #tpu.core_type<tc>} {
    %c0 = arith.constant 0 : index
    %c0_0 = arith.constant 0 : index
    %0 = vector.load %arg0[%c0, %c0_0] : memref<32x4xf32, #tpu.memory_space<vmem>>, vector<32x4xf32>
    %c0_1 = arith.constant 0 : index
    %c0_2 = arith.constant 0 : index
    %1 = vector.load %arg1[%c0_1, %c0_2] : memref<32x4xf32, #tpu.memory_space<vmem>>, vector<32x4xf32>
    tpu.vector_store %arg1[%c0_1, %c0_2], %0 {strides = array<i32>} : memref<32x4xf32, #tpu.memory_space<vmem>>, vector<32x4xf32>,
    return
  }
}

</mosaic_0001>

<llo_original>
// kernel: tpu_custom_call.1
$region0: #{tpu_custom_call.1}
  #allocation0 [shape = 'u32[]', space=smem, size = 0x4, offset = 0x4, fixed_abs, tag = 'smem constant byte address 0x4 - core index']
  #allocation1 [shape = 'u32[144,128]{1,0:T(1,128)}', space=vmem, size = 0x12000, scoped, tag = 'internal scratch']
  %s0 = inlined_call_operand.vmem [shape: f32[32,4], index: 0, kind: input, shape index: {}]
  %s1 = inlined_call_operand.vmem [shape: f32[32,4], index: 1, kind: output, shape index: {}]
  %s2 = sld [smem:[#allocation0]]
  $region14: #{tpu_custom_call.1} parent=0
    _
  %s4 = ssub.s32 1, %s2
  %s5 = scalar_select 0, %s4, %s2
  // Predicated region
  $region2: #{tpu_custom_call.1} parent=0 // pred_check
    _
  $region3: #{tpu_custom_call.1} parent=0 // pred_check_branch
    %7 = sbr.rel (0) target = $region5
  $region4: #{tpu_custom_call.1} parent=0 // pred_region
    _
  $region5: #{tpu_custom_call.1} parent=0 // pred_fallthru
    _
  %v8 = vld [vmem:[%s0] sm:$0xff]
  %v9 = vld [vmem:[%s0 + $0x8] sm:$0xff]
  %v10 = vld [vmem:[%s0 + $0x10] sm:$0xff]
  %v11 = vld [vmem:[%s0 + $0x18] sm:$0xff]
  %vm12 = vcmask 31744
  %13 = vst.msk [vmem:[%s1] sm:$0xff] %vm12, %v8
  %14 = vst.msk [vmem:[%s1 + $0x8] sm:$0xff] %vm12, %v9
  %15 = vst.msk [vmem:[%s1 + $0x10] sm:$0xff] %vm12, %v10
  %16 = vst.msk [vmem:[%s1 + $0x18] sm:$0xff] %vm12, %v11
  // Predicated region
  $region6: #{tpu_custom_call.1} parent=0 // pred_check
    _
  $region7: #{tpu_custom_call.1} parent=0 // pred_check_branch
    %18 = sbr.rel (0) target = $region9
  $region8: #{tpu_custom_call.1} parent=0 // pred_region
    _
  $region9: #{tpu_custom_call.1} parent=0 // pred_fallthru
    _
  // Predicated region
  $region10: #{tpu_custom_call.1} parent=0 // pred_check
    _
  $region11: #{tpu_custom_call.1} parent=0 // pred_check_branch
    %20 = sbr.rel (0) target = $region13
  $region12: #{tpu_custom_call.1} parent=0 // pred_region
    _
  $region13: #{tpu_custom_call.1} parent=0 // pred_fallthru
    _

</llo_original>
